<compile_context>
chip_gen: v6e
topology: v6e:2x2x1
jax: 0.10.0
libtpu: 0.0.40
codegen_flags: <defaults>
</compile_context>

<pallas_src>
import functools

import jax
import jax.numpy as jnp
from jax.experimental import pallas as pl
from jax.experimental.pallas import tpu as pltpu


def _gcn_kernel(num_layers,
                adj_ref, feat_ref, w0_ref, b0_ref, wr_ref, br_ref,
                out_ref, mask_ref):
    """One grid step == one batch tile (Bt graphs)."""
    f32 = jnp.float32
    adj = adj_ref[...].astype(f32)                      # (Bt, N, N)
    feat = feat_ref[...].astype(f32)                    # (Bt, N, Din)
    bt, n, _ = adj.shape

    # Row sums computed once, reused for denom (loop-invariant) and mask.
    row_sum = jnp.sum(adj, axis=2, keepdims=True)       # (Bt, N, 1)
    inv_denom = 1.0 / (row_sum + 1.0)                   # (Bt, N, 1)

    # mask = (adj.sum(2) + adj.sum(1)) == 0, lane-dense layout (Bt, 1, N).
    col_sum = jnp.sum(adj, axis=1, keepdims=True)       # (Bt, 1, N)
    row_sum_lane = jnp.transpose(row_sum, (0, 2, 1))    # (Bt, 1, N)
    mask_ref[...] = ((col_sum + row_sum_lane) == 0.0).astype(mask_ref.dtype)

    for l in range(num_layers):
        # Ax = adj @ feat  (batched MXU matmul; adj consumed directly, no .T).
        ax = jnp.einsum('bij,bjd->bid', adj, feat, preferred_element_type=f32)
        x = ax + feat                                    # (Bt, N, Dl)
        if l == 0:
            w = w0_ref[...].astype(f32)                  # (Din, H)
            b = b0_ref[...].astype(f32)                  # (1, H)
        else:
            w = wr_ref[l - 1].astype(f32)                # (H, H)
            b = br_ref[l - 1].astype(f32)                # (1, H)
        dl = x.shape[-1]
        h = w.shape[-1]
        # W_l(Ax) + W_l(feat) == (Ax + feat) @ W_l^T + 2*b_l
        # (flatten batch*nodes so the MXU M dimension is filled).
        y = jnp.dot(x.reshape(bt * n, dl), w,
                    preferred_element_type=f32).reshape(bt, n, h)
        y = (y + 2.0 * b) * inv_denom
        feat = jnp.maximum(y, 0.0)                       # ReLU on the VPU
        # TODO(synk): nn.Dropout(args.gcn_dropout) between layers is the
        # inference-mode identity here (no stochastic masking in-kernel).

    out_ref[...] = feat.astype(out_ref.dtype)


def gcn_forward(adj, feature, weights, biases, *, block_b=None):
    """adj: (B, N, N); feature: (B, N, in_dim).
    weights[l]: torch-layout (out, in); biases[l]: (out,)."""
    B, N, _ = adj.shape
    din = feature.shape[-1]
    L = len(weights)
    H = weights[0].shape[0]

    if block_b is None:
        block_b = B
    assert B % block_b == 0, "batch must be divisible by the batch tile"

    f32 = jnp.float32
    # Pre-transpose torch Linear weights (out, in) -> (in, out): no .T in-kernel.
    w0_t = jnp.asarray(weights[0], f32).T                       # (Din, H)
    b0 = jnp.asarray(biases[0], f32).reshape(1, H)
    if L > 1:
        wr_t = jnp.stack([jnp.asarray(w, f32).T for w in weights[1:]])  # (L-1, H, H)
        br = jnp.stack([jnp.asarray(b, f32).reshape(1, H) for b in biases[1:]])
    else:
        wr_t = jnp.zeros((1, H, H), f32)                        # dummy, never read
        br = jnp.zeros((1, 1, H), f32)
    lr = wr_t.shape[0]

    kernel = functools.partial(_gcn_kernel, L)

    out, mask_f = pl.pallas_call(
        kernel,
        out_shape=(
            jax.ShapeDtypeStruct((B, N, H), f32),
            jax.ShapeDtypeStruct((B, 1, N), f32),    # lane-dense mask
        ),
        grid_spec=pltpu.PrefetchScalarGridSpec(
            num_scalar_prefetch=0,
            grid=(B // block_b,),
            in_specs=[
                pl.BlockSpec((block_b, N, N), lambda b: (b, 0, 0)),     # adj
                pl.BlockSpec((block_b, N, din), lambda b: (b, 0, 0)),   # feature
                pl.BlockSpec((din, H), lambda b: (0, 0)),               # W0^T
                pl.BlockSpec((1, H), lambda b: (0, 0)),                 # b0
                pl.BlockSpec((lr, H, H), lambda b: (0, 0, 0)),          # W1..^T
                pl.BlockSpec((lr, 1, H), lambda b: (0, 0, 0)),          # b1..
            ],
            out_specs=(
                pl.BlockSpec((block_b, N, H), lambda b: (b, 0, 0)),     # feature out
                pl.BlockSpec((block_b, 1, N), lambda b: (b, 0, 0)),     # mask
            ),
        ),
        compiler_params=pltpu.CompilerParams(
            dimension_semantics=("parallel",)),
    )(adj.astype(f32), feature.astype(f32), w0_t, b0, wr_t, br)

    mask = jnp.transpose(mask_f, (0, 2, 1)) > 0.5     # (B, N, 1) boolean, as in torch
    return out, mask


def _gcn_reference(adj, feature, weights, biases):
    """Pure-JAX reference mirroring the torch module (eval mode)."""
    denom = jnp.sum(adj, axis=2, keepdims=True) + 1.0
    mask = ((jnp.sum(adj, axis=2) + jnp.sum(adj, axis=1)) == 0.0)[..., None]
    feat = feature
    for w, b in zip(weights, biases):
        ax = jnp.einsum('bij,bjd->bid', adj, feat)
        axw = (ax @ w.T + b) + (feat @ w.T + b)
        feat = jax.nn.relu(axw / denom)
    return feat, mask


if __name__ == "__main__":
    B, N, DIN, H, L = 2, 8, 16, 32, 3

    key = jax.random.PRNGKey(0)
    keys = jax.random.split(key, 2 + 2 * L)
    k_adj, k_feat, wkeys = keys[0], keys[1], keys[2:]

    adj = (jax.random.uniform(k_adj, (B, N, N)) > 0.6).astype(jnp.float32)
    # isolate the last node so the returned mask exercises both values
    adj = adj.at[:, N - 1, :].set(0.0).at[:, :, N - 1].set(0.0)
    feature = jax.random.normal(k_feat, (B, N, DIN), dtype=jnp.float32)

    weights, biases = [], []
    for l in range(L):
        in_d = DIN if l == 0 else H
        w = jax.random.normal(wkeys[2 * l], (H, in_d), dtype=jnp.float32) / jnp.sqrt(
            jnp.float32(in_d))
        b = 0.1 * jax.random.normal(wkeys[2 * l + 1], (H,), dtype=jnp.float32)
        weights.append(w)
        biases.append(b)

    fn = jax.jit(gcn_forward)
    out, mask = fn(adj, feature, weights, biases)
    jax.block_until_ready((out, mask))

    out_ref, mask_ref = _gcn_reference(adj, feature, weights, biases)
    assert out.shape == (B, N, H)
    assert mask.shape == (B, N, 1)
    assert jnp.allclose(out, out_ref, atol=1e-4, rtol=1e-4), "feature mismatch"
    assert bool(jnp.array_equal(mask, mask_ref)), "mask mismatch"
    print("KERNEL_OK")
</pallas_src>

<mosaic_0001>
module attributes {stable_mosaic.version = 11 : i64} {
  func.func @_gcn_kernel(%arg0: i32, %arg1: memref<2x8x8xf32, #tpu.memory_space<vmem>>, %arg2: memref<2x8x16xf32, #tpu.memory_space<vmem>>, %arg3: memref<16x32xf32, #tpu.memory_space<vmem>>, %arg4: memref<1x32xf32, #tpu.memory_space<vmem>>, %arg5: memref<2x32x32xf32, #tpu.memory_space<vmem>>, %arg6: memref<2x1x32xf32, #tpu.memory_space<vmem>>, %arg7: memref<2x8x32xf32, #tpu.memory_space<vmem>>, %arg8: memref<2x1x8xf32, #tpu.memory_space<vmem>>) attributes {dimension_semantics = [#tpu.dimension_semantics<parallel>], iteration_bounds = array<i64: 1>, scalar_prefetch = 0 : i64, scratch_operands = 0 : i64, tpu.core_type = #tpu.core_type<tc>, window_params = [{transform_indices = @transform_0, window_bounds = array<i64: 2, 8, 8>}, {transform_indices = @transform_1, window_bounds = array<i64: 2, 8, 16>}, {pipeline_mode = #tpu.pipeline_mode<synchronous>, transform_indices = @transform_2, window_bounds = array<i64: 16, 32>}, {pipeline_mode = #tpu.pipeline_mode<synchronous>, transform_indices = @transform_3, window_bounds = array<i64: 1, 32>}, {pipeline_mode = #tpu.pipeline_mode<synchronous>, transform_indices = @transform_4, window_bounds = array<i64: 2, 32, 32>}, {pipeline_mode = #tpu.pipeline_mode<synchronous>, transform_indices = @transform_5, window_bounds = array<i64: 2, 1, 32>}, {transform_indices = @transform_6, window_bounds = array<i64: 2, 8, 32>}, {transform_indices = @transform_7, window_bounds = array<i64: 2, 1, 8>}]} {
    %c0 = arith.constant 0 : index
    %c0_0 = arith.constant 0 : index
    %c0_1 = arith.constant 0 : index
    %0 = vector.load %arg1[%c0, %c0_0, %c0_1] : memref<2x8x8xf32, #tpu.memory_space<vmem>>, vector<2x8x8xf32>
    %c0_2 = arith.constant 0 : index
    %c0_3 = arith.constant 0 : index
    %c0_4 = arith.constant 0 : index
    %1 = vector.load %arg2[%c0_2, %c0_3, %c0_4] : memref<2x8x16xf32, #tpu.memory_space<vmem>>, vector<2x8x16xf32>
    %cst = arith.constant dense<0.000000e+00> : vector<2x8xf32>
    %2 = vector.multi_reduction <add>, %0, %cst [2] : vector<2x8x8xf32> to vector<2x8xf32>
    %3 = vector.shape_cast %2 : vector<2x8xf32> to vector<2x8x1xf32>
    %cst_5 = arith.constant 1.000000e+00 : f32
    %4 = vector.broadcast %cst_5 : f32 to vector<2x8x1xf32>
    %5 = arith.addf %3, %4 : vector<2x8x1xf32>
    %cst_6 = arith.constant 1.000000e+00 : f32
    %6 = vector.broadcast %cst_6 : f32 to vector<2x8x1xf32>
    %7 = arith.divf %6, %5 : vector<2x8x1xf32>
    %cst_7 = arith.constant dense<0.000000e+00> : vector<2x8xf32>
    %8 = vector.multi_reduction <add>, %0, %cst_7 [1] : vector<2x8x8xf32> to vector<2x8xf32>
    %9 = vector.shape_cast %8 : vector<2x8xf32> to vector<2x1x8xf32>
    %10 = tpu.transpose %3, [0, 2, 1] : vector<2x8x1xf32> -> vector<2x1x8xf32>
    %11 = arith.addf %9, %10 : vector<2x1x8xf32>
    %cst_8 = arith.constant 0.000000e+00 : f32
    %12 = vector.broadcast %cst_8 : f32 to vector<2x1x8xf32>
    %13 = arith.cmpf oeq, %11, %12 : vector<2x1x8xf32>
    %14 = arith.extui %13 : vector<2x1x8xi1> to vector<2x1x8xi32>
    %15 = arith.sitofp %14 : vector<2x1x8xi32> to vector<2x1x8xf32>
    %c0_9 = arith.constant 0 : index
    %c0_10 = arith.constant 0 : index
    %c0_11 = arith.constant 0 : index
    %16 = vector.load %arg8[%c0_9, %c0_10, %c0_11] : memref<2x1x8xf32, #tpu.memory_space<vmem>>, vector<2x1x8xf32>
    tpu.vector_store %arg8[%c0_9, %c0_10, %c0_11], %15 {strides = array<i32>} : memref<2x1x8xf32, #tpu.memory_space<vmem>>, vector<2x1x8xf32>,
    "tpu.trace_start"() <{level = 10 : i32, message = "bij,bjd->bid"}> : () -> ()
    %cst_12 = arith.constant dense<0.000000e+00> : vector<2x8x16xf32>
    %17 = tpu.matmul %0, %1, %cst_12 {dimension_numbers = #tpu.dot_dimension_numbers<[2], [1], [1], [2], [0, 0, 0, 1, 1, 2], [0], [0]>} : vector<2x8x8xf32>, vector<2x8x16xf32>, vector<2x8x16xf32> -> vector<2x8x16xf32>
    "tpu.trace_stop"() : () -> ()
    %18 = arith.addf %17, %1 : vector<2x8x16xf32>
    %c0_13 = arith.constant 0 : index
    %c0_14 = arith.constant 0 : index
    %19 = vector.load %arg3[%c0_13, %c0_14] : memref<16x32xf32, #tpu.memory_space<vmem>>, vector<16x32xf32>
    %c0_15 = arith.constant 0 : index
    %c0_16 = arith.constant 0 : index
    %20 = vector.load %arg4[%c0_15, %c0_16] : memref<1x32xf32, #tpu.memory_space<vmem>>, vector<1x32xf32>
    %21 = vector.shape_cast %18 : vector<2x8x16xf32> to vector<16x16xf32>
    %cst_17 = arith.constant dense<0.000000e+00> : vector<16x32xf32>
    %22 = tpu.matmul %21, %19, %cst_17 {dimension_numbers = #tpu.dot_dimension_numbers<[1], [0], [0], [1], [0, 0, 1, 1], [], []>} : vector<16x16xf32>, vector<16x32xf32>, vector<16x32xf32> -> vector<16x32xf32>
    %23 = vector.shape_cast %22 : vector<16x32xf32> to vector<2x8x32xf32>
    %cst_18 = arith.constant 2.000000e+00 : f32
    %24 = vector.broadcast %cst_18 : f32 to vector<1x32xf32>
    %25 = arith.mulf %24, %20 : vector<1x32xf32>
    %26 = vector.shape_cast %25 : vector<1x32xf32> to vector<1x1x32xf32>
    %27 = vector.broadcast %26 : vector<1x1x32xf32> to vector<2x8x32xf32>
    %28 = arith.addf %23, %27 : vector<2x8x32xf32>
    %29 = vector.broadcast %7 : vector<2x8x1xf32> to vector<2x8x32xf32>
    %30 = arith.mulf %28, %29 : vector<2x8x32xf32>
    %cst_19 = arith.constant 0.000000e+00 : f32
    %31 = vector.broadcast %cst_19 : f32 to vector<2x8x32xf32>
    %32 = arith.maximumf %30, %31 : vector<2x8x32xf32>
    "tpu.trace_start"() <{level = 10 : i32, message = "bij,bjd->bid"}> : () -> ()
    %cst_20 = arith.constant dense<0.000000e+00> : vector<2x8x32xf32>
    %33 = tpu.matmul %0, %32, %cst_20 {dimension_numbers = #tpu.dot_dimension_numbers<[2], [1], [1], [2], [0, 0, 0, 1, 1, 2], [0], [0]>} : vector<2x8x8xf32>, vector<2x8x32xf32>, vector<2x8x32xf32> -> vector<2x8x32xf32>
    "tpu.trace_stop"() : () -> ()
    %34 = arith.addf %33, %32 : vector<2x8x32xf32>
    %c0_21 = arith.constant 0 : index
    %c0_22 = arith.constant 0 : index
    %c0_23 = arith.constant 0 : index
    %35 = vector.load %arg5[%c0_21, %c0_22, %c0_23] : memref<2x32x32xf32, #tpu.memory_space<vmem>>, vector<1x32x32xf32>
    %36 = vector.shape_cast %35 : vector<1x32x32xf32> to vector<32x32xf32>
    %c0_24 = arith.constant 0 : index
    %c0_25 = arith.constant 0 : index
    %c0_26 = arith.constant 0 : index
    %37 = vector.load %arg6[%c0_24, %c0_25, %c0_26] : memref<2x1x32xf32, #tpu.memory_space<vmem>>, vector<1x1x32xf32>
    %38 = vector.shape_cast %37 : vector<1x1x32xf32> to vector<1x32xf32>
    %39 = vector.shape_cast %34 : vector<2x8x32xf32> to vector<16x32xf32>
    %cst_27 = arith.constant dense<0.000000e+00> : vector<16x32xf32>
    %40 = tpu.matmul %39, %36, %cst_27 {dimension_numbers = #tpu.dot_dimension_numbers<[1], [0], [0], [1], [0, 0, 1, 1], [], []>} : vector<16x32xf32>, vector<32x32xf32>, vector<16x32xf32> -> vector<16x32xf32>
    %41 = vector.shape_cast %40 : vector<16x32xf32> to vector<2x8x32xf32>
    %cst_28 = arith.constant 2.000000e+00 : f32
    %42 = vector.broadcast %cst_28 : f32 to vector<1x32xf32>
    %43 = arith.mulf %42, %38 : vector<1x32xf32>
    %44 = vector.shape_cast %43 : vector<1x32xf32> to vector<1x1x32xf32>
    %45 = vector.broadcast %44 : vector<1x1x32xf32> to vector<2x8x32xf32>
    %46 = arith.addf %41, %45 : vector<2x8x32xf32>
    %47 = vector.broadcast %7 : vector<2x8x1xf32> to vector<2x8x32xf32>
    %48 = arith.mulf %46, %47 : vector<2x8x32xf32>
    %cst_29 = arith.constant 0.000000e+00 : f32
    %49 = vector.broadcast %cst_29 : f32 to vector<2x8x32xf32>
    %50 = arith.maximumf %48, %49 : vector<2x8x32xf32>
    "tpu.trace_start"() <{level = 10 : i32, message = "bij,bjd->bid"}> : () -> ()
    %cst_30 = arith.constant dense<0.000000e+00> : vector<2x8x32xf32>
    %51 = tpu.matmul %0, %50, %cst_30 {dimension_numbers = #tpu.dot_dimension_numbers<[2], [1], [1], [2], [0, 0, 0, 1, 1, 2], [0], [0]>} : vector<2x8x8xf32>, vector<2x8x32xf32>, vector<2x8x32xf32> -> vector<2x8x32xf32>
    "tpu.trace_stop"() : () -> ()
    %52 = arith.addf %51, %50 : vector<2x8x32xf32>
    %c1 = arith.constant 1 : index
    %c0_31 = arith.constant 0 : index
    %c0_32 = arith.constant 0 : index
    %53 = vector.load %arg5[%c1, %c0_31, %c0_32] : memref<2x32x32xf32, #tpu.memory_space<vmem>>, vector<1x32x32xf32>
    %54 = vector.shape_cast %53 : vector<1x32x32xf32> to vector<32x32xf32>
    %c1_33 = arith.constant 1 : index
    %c0_34 = arith.constant 0 : index
    %c0_35 = arith.constant 0 : index
    %55 = vector.load %arg6[%c1_33, %c0_34, %c0_35] : memref<2x1x32xf32, #tpu.memory_space<vmem>>, vector<1x1x32xf32>
    %56 = vector.shape_cast %55 : vector<1x1x32xf32> to vector<1x32xf32>
    %57 = vector.shape_cast %52 : vector<2x8x32xf32> to vector<16x32xf32>
    %cst_36 = arith.constant dense<0.000000e+00> : vector<16x32xf32>
    %58 = tpu.matmul %57, %54, %cst_36 {dimension_numbers = #tpu.dot_dimension_numbers<[1], [0], [0], [1], [0, 0, 1, 1], [], []>} : vector<16x32xf32>, vector<32x32xf32>, vector<16x32xf32> -> vector<16x32xf32>
    %59 = vector.shape_cast %58 : vector<16x32xf32> to vector<2x8x32xf32>
    %cst_37 = arith.constant 2.000000e+00 : f32
    %60 = vector.broadcast %cst_37 : f32 to vector<1x32xf32>
    %61 = arith.mulf %60, %56 : vector<1x32xf32>
    %62 = vector.shape_cast %61 : vector<1x32xf32> to vector<1x1x32xf32>
    %63 = vector.broadcast %62 : vector<1x1x32xf32> to vector<2x8x32xf32>
    %64 = arith.addf %59, %63 : vector<2x8x32xf32>
    %65 = vector.broadcast %7 : vector<2x8x1xf32> to vector<2x8x32xf32>
    %66 = arith.mulf %64, %65 : vector<2x8x32xf32>
    %cst_38 = arith.constant 0.000000e+00 : f32
    %67 = vector.broadcast %cst_38 : f32 to vector<2x8x32xf32>
    %68 = arith.maximumf %66, %67 : vector<2x8x32xf32>
    %c0_39 = arith.constant 0 : index
    %c0_40 = arith.constant 0 : index
    %c0_41 = arith.constant 0 : index
    %69 = vector.load %arg7[%c0_39, %c0_40, %c0_41] : memref<2x8x32xf32, #tpu.memory_space<vmem>>, vector<2x8x32xf32>
    tpu.vector_store %arg7[%c0_39, %c0_40, %c0_41], %68 {strides = array<i32>} : memref<2x8x32xf32, #tpu.memory_space<vmem>>, vector<2x8x32xf32>,
    return
  }
  func.func @transform_0(%arg0: i32) -> (i32, i32, i32) {
    %c0_i32 = arith.constant 0 : i32
    %c0_i32_0 = arith.constant 0 : i32
    %c0_i32_1 = arith.constant 0 : i32
    return %arg0, %c0_i32, %c0_i32_0 : i32, i32, i32
  }
  func.func @transform_1(%arg0: i32) -> (i32, i32, i32) {
    %c0_i32 = arith.constant 0 : i32
    %c0_i32_0 = arith.constant 0 : i32
    %c0_i32_1 = arith.constant 0 : i32
    return %arg0, %c0_i32, %c0_i32_0 : i32, i32, i32
  }
  func.func @transform_2(%arg0: i32) -> (i32, i32) {
    %c0_i32 = arith.constant 0 : i32
    %c0_i32_0 = arith.constant 0 : i32
    %c0_i32_1 = arith.constant 0 : i32
    return %c0_i32, %c0_i32_0 : i32, i32
  }
  func.func @transform_3(%arg0: i32) -> (i32, i32) {
    %c0_i32 = arith.constant 0 : i32
    %c0_i32_0 = arith.constant 0 : i32
    %c0_i32_1 = arith.constant 0 : i32
    return %c0_i32, %c0_i32_0 : i32, i32
  }
  func.func @transform_4(%arg0: i32) -> (i32, i32, i32) {
    %c0_i32 = arith.constant 0 : i32
    %c0_i32_0 = arith.constant 0 : i32
    %c0_i32_1 = arith.constant 0 : i32
    %c0_i32_2 = arith.constant 0 : i32
    return %c0_i32, %c0_i32_0, %c0_i32_1 : i32, i32, i32
  }
  func.func @transform_5(%arg0: i32) -> (i32, i32, i32) {
    %c0_i32 = arith.constant 0 : i32
    %c0_i32_0 = arith.constant 0 : i32
    %c0_i32_1 = arith.constant 0 : i32
    %c0_i32_2 = arith.constant 0 : i32
    return %c0_i32, %c0_i32_0, %c0_i32_1 : i32, i32, i32
  }
  func.func @transform_6(%arg0: i32) -> (i32, i32, i32) {
    %c0_i32 = arith.constant 0 : i32
    %c0_i32_0 = arith.constant 0 : i32
    %c0_i32_1 = arith.constant 0 : i32
    return %arg0, %c0_i32, %c0_i32_0 : i32, i32, i32
  }
  func.func @transform_7(%arg0: i32) -> (i32, i32, i32) {
    %c0_i32 = arith.constant 0 : i32
    %c0_i32_0 = arith.constant 0 : i32
    %c0_i32_1 = arith.constant 0 : i32
    return %arg0, %c0_i32, %c0_i32_0 : i32, i32, i32
  }
}

</mosaic_0001>

<llo_original>
// kernel: gcn_forward.1
$region0: #{gcn_forward.1}
  #allocation0 [shape = 'u32[]', space=smem, size = 0x4, offset = 0x4, fixed_abs, tag = 'smem constant byte address 0x4 - core index']
  #allocation1 [shape = 'u32[144,128]{1,0:T(1,128)}', space=vmem, size = 0x12000, scoped, tag = 'internal scratch']
  %s0 = inlined_call_operand.vmem [shape: f32[2,8,8], index: 0, kind: input, shape index: {}]
  %s1 = inlined_call_operand.vmem [shape: f32[2,8,16], index: 1, kind: input, shape index: {}]
  %s2 = inlined_call_operand.vmem [shape: f32[16,32], index: 2, kind: input, shape index: {}]
  %s3 = inlined_call_operand.vmem [shape: f32[1,32], index: 3, kind: input, shape index: {}]
  %s4 = inlined_call_operand.vmem [shape: f32[2,32,32], index: 4, kind: input, shape index: {}]
  %s5 = inlined_call_operand.vmem [shape: f32[2,1,32], index: 5, kind: input, shape index: {}]
  %s6 = inlined_call_operand.hbm [shape: f32[2,8,32], index: 6, kind: output, shape index: {0}]
  %s7 = inlined_call_operand.vmem [shape: f32[2,1,8], index: 7, kind: output, shape index: {1}]
  %8 = xla_tuple %s6, %s7
  %s9 = sld [smem:[#allocation0]]
  $region42: #{gcn_forward.1} parent=0
    _
  %s11 = ssub.s32 1, %s9
  %s12 = scalar_select 0, %s11, %s9
  $region1: #{gcn_forward.1} parent=0
    #allocation2 [shape = 'u8[8192]{0}', space=vmem, size = 0x2000, scoped, tag = 'output window, operand 0, single buffered']
    #allocation3 [shape = 's32[1]{0}', space=sflag, size = 0x4, scoped, tag = 'scoped memory for gcn_forward.1']
    %13 = vsyncpa [#allocation3], 0
    // Predicated region
    $region2: #{gcn_forward.1} parent=1 // pred_check
      _
    $region3: #{gcn_forward.1} parent=1 // pred_check_branch
      %15 = sbr.rel (0) target = $region5
    $region4: #{gcn_forward.1} parent=1 // pred_region
      _
    $region5: #{gcn_forward.1} parent=1 // pred_fallthru
      _
    // Predicated region
    $region6: #{gcn_forward.1} parent=1 // pred_check
      _
    $region7: #{gcn_forward.1} parent=1 // pred_check_branch
      %17 = sbr.rel (0) target = $region9
    $region8: #{gcn_forward.1} parent=1 // pred_region
      _
    $region9: #{gcn_forward.1} parent=1 // pred_fallthru
      _
    // Predicated region
    $region10: #{gcn_forward.1} parent=1 // pred_check
      _
    $region11: #{gcn_forward.1} parent=1 // pred_check_branch
      %19 = sbr.rel (0) target = $region13
    $region12: #{gcn_forward.1} parent=1 // pred_region
      _
    $region13: #{gcn_forward.1} parent=1 // pred_fallthru
      _
    // Predicated region
    $region14: #{gcn_forward.1} parent=1 // pred_check
      _
    $region15: #{gcn_forward.1} parent=1 // pred_check_branch
      %21 = sbr.rel (0) target = $region17
    $region16: #{gcn_forward.1} parent=1 // pred_region
      _
    $region17: #{gcn_forward.1} parent=1 // pred_fallthru
      _
    // Predicated region
    $region18: #{gcn_forward.1} parent=1 // pred_check
      _
    $region19: #{gcn_forward.1} parent=1 // pred_check_branch
      %23 = sbr.rel (0) target = $region21
    $region20: #{gcn_forward.1} parent=1 // pred_region
      _
    $region21: #{gcn_forward.1} parent=1 // pred_fallthru
      _
    // Predicated region
    $region22: #{gcn_forward.1} parent=1 // pred_check
      _
    $region23: #{gcn_forward.1} parent=1 // pred_check_branch
      %25 = sbr.rel (0) target = $region25
    $region24: #{gcn_forward.1} parent=1 // pred_region
      _
    $region25: #{gcn_forward.1} parent=1 // pred_fallthru
      _
    %v26 = vld [vmem:[%s0] sm:$0xff]
    %v27 = vld [vmem:[%s0 + $0x8] sm:$0xff]
    %v28 = vld [vmem:[%s1] sm:$0xff]
    %v29 = vld [vmem:[%s1 + $0x8] sm:$0xff]
    %vm30 = vcmask 64512
    %v31 = vsel %vm30, %v26, 0.0
    %32 = vadd.xlane.f32.xlu0 %v31
    %v33 = vpop.xlane.xlu0 %32
    %v34 = vsel %vm30, %v27, 0.0
    %35 = vadd.xlane.f32.xlu0 %v34
    %v36 = vpop.xlane.xlu0 %35
    %v37 = vadd.f32 %v33, 1.0
    %v38 = vadd.f32 %v36, 1.0
    %v39 = vrcp.pop %v37
    %v40 = vmul.f32 1.0, %v39
    %v41 = vrcp.pop %v38
    %v42 = vmul.f32 1.0, %v41
    %v43 = vrot.slane %v31, 4
    %v44 = vadd.f32 %v31, %v43
    %v45 = vrot.slane %v44, 2
    %v46 = vadd.f32 %v44, %v45
    %v47 = vrot.slane %v46, 1
    %v48 = vadd.f32 %v46, %v47
    %v49 = vrot.slane %v34, 4
    %v50 = vadd.f32 %v34, %v49
    %v51 = vrot.slane %v50, 2
    %v52 = vadd.f32 %v50, %v51
    %v53 = vrot.slane %v52, 1
    %v54 = vadd.f32 %v52, %v53
    %55 = vxpose.xlu0.b32.start [1/16] %v33, 128
    %56 = vxpose.xlu0.b32.cont [2/16] 0.0, 128
    %57 = vxpose.xlu0.b32.cont [3/16] 0.0, 128
    %58 = vxpose.xlu0.b32.cont [4/16] 0.0, 128
    %59 = vxpose.xlu0.b32.cont [5/16] 0.0, 128
    %60 = vxpose.xlu0.b32.cont [6/16] 0.0, 128
    %61 = vxpose.xlu0.b32.cont [7/16] 0.0, 128
    %62 = vxpose.xlu0.b32.cont [8/16] 0.0, 128
    %63 = vxpose.xlu0.b32.cont [9/16] 0.0, 128
    %64 = vxpose.xlu0.b32.cont [10/16] 0.0, 128
    %65 = vxpose.xlu0.b32.cont [11/16] 0.0, 128
    %66 = vxpose.xlu0.b32.cont [12/16] 0.0, 128
    %67 = vxpose.xlu0.b32.cont [13/16] 0.0, 128
    %68 = vxpose.xlu0.b32.cont [14/16] 0.0, 128
    %69 = vxpose.xlu0.b32.cont [15/16] 0.0, 128
    %70 = vxpose.xlu0.b32.end [16/16] 0.0, 128
    %v71 = vpop.trf.xlu0
    %v72 = vpop.trf.xlu0
    %v73 = vpop.trf.xlu0
    %v74 = vpop.trf.xlu0
    %v75 = vpop.trf.xlu0
    %v76 = vpop.trf.xlu0
    %v77 = vpop.trf.xlu0
    %v78 = vpop.trf.xlu0
    %v79 = vpop.trf.xlu0
    %v80 = vpop.trf.xlu0
    %v81 = vpop.trf.xlu0
    %v82 = vpop.trf.xlu0
    %v83 = vpop.trf.xlu0
    %v84 = vpop.trf.xlu0
    %v85 = vpop.trf.xlu0
    %v86 = vpop.trf.xlu0
    %87 = vxpose.xlu0.b32.start [1/16] %v36, 128
    %88 = vxpose.xlu0.b32.cont [2/16] 0.0, 128
    %89 = vxpose.xlu0.b32.cont [3/16] 0.0, 128
    %90 = vxpose.xlu0.b32.cont [4/16] 0.0, 128
    %91 = vxpose.xlu0.b32.cont [5/16] 0.0, 128
    %92 = vxpose.xlu0.b32.cont [6/16] 0.0, 128
    %93 = vxpose.xlu0.b32.cont [7/16] 0.0, 128
    %94 = vxpose.xlu0.b32.cont [8/16] 0.0, 128
    %95 = vxpose.xlu0.b32.cont [9/16] 0.0, 128
    %96 = vxpose.xlu0.b32.cont [10/16] 0.0, 128
    %97 = vxpose.xlu0.b32.cont [11/16] 0.0, 128
    %98 = vxpose.xlu0.b32.cont [12/16] 0.0, 128
    %99 = vxpose.xlu0.b32.cont [13/16] 0.0, 128
    %100 = vxpose.xlu0.b32.cont [14/16] 0.0, 128
    %101 = vxpose.xlu0.b32.cont [15/16] 0.0, 128
    %102 = vxpose.xlu0.b32.end [16/16] 0.0, 128
    %v103 = vpop.trf.xlu0
    %v104 = vpop.trf.xlu0
    %v105 = vpop.trf.xlu0
    %v106 = vpop.trf.xlu0
    %v107 = vpop.trf.xlu0
    %v108 = vpop.trf.xlu0
    %v109 = vpop.trf.xlu0
    %v110 = vpop.trf.xlu0
    %v111 = vpop.trf.xlu0
    %v112 = vpop.trf.xlu0
    %v113 = vpop.trf.xlu0
    %v114 = vpop.trf.xlu0
    %v115 = vpop.trf.xlu0
    %v116 = vpop.trf.xlu0
    %v117 = vpop.trf.xlu0
    %v118 = vpop.trf.xlu0
    %v119 = vadd.f32 %v48, %v71
    %v120 = vadd.f32 %v54, %v103
    %vm121 = vcmp.eq.f32.partialorder %v119, 0.0
    %vm122 = vcmp.eq.f32.partialorder %v120, 0.0
    %v123 = vsel %vm121, 1, 0
    %v124 = vsel %vm122, 1, 0
    %v125 = vcvt.s32.f32 %v123
    %v126 = vcvt.s32.f32 %v124
    %vm127 = vcmask 57344
    %128 = vst.msk [vmem:[%s7] sm:$0x1] %vm127, %v125
    %129 = vst.msk [vmem:[%s7 + $0x1] sm:$0x1] %vm127, %v126
    %v131 = vsel %vm30, %v26, 0
    %133 = vmatprep.subr.mxu0 0.0
    %134 = vmatpush1.msra.mxu0 0.0
    %135 = vmatprep.subr.mxu0 0.0
    %136 = vmatpush1.msra.mxu0 0.0
    %137 = vmatprep.subr.mxu0 0.0
    %138 = vmatpush1.msra.mxu0 0.0
    %139 = vmatprep.subr.mxu0 0.0
    %140 = vmatpush1.msra.mxu0 0.0
    %141 = vmatprep.subr.mxu0 0.0
    %142 = vmatpush1.msra.mxu0 0.0
    %143 = vmatprep.subr.mxu0 0.0
    %144 = vmatpush1.msra.mxu0 0.0
    %145 = vmatprep.subr.mxu0 0.0
    %146 = vmatpush1.msra.mxu0 0.0
    %147 = vmatprep.subr.mxu0 0.0
    %148 = vmatpush1.msra.mxu0 0.0
    %149 = vmatprep.subr.mxu0 0.0
    %150 = vmatpush1.msra.mxu0 0.0
    %151 = vmatprep.subr.mxu0 0.0
    %152 = vmatpush1.msra.mxu0 0.0
    %153 = vmatprep.subr.mxu0 0.0
    %154 = vmatpush1.msra.mxu0 0.0
    %155 = vmatprep.subr.mxu0 0.0
    %156 = vmatpush1.msra.mxu0 0.0
    %157 = vmatprep.subr.mxu0 0.0
    %158 = vmatpush1.msra.mxu0 0.0
    %159 = vmatprep.subr.mxu0 0.0
    %160 = vmatpush1.msra.mxu0 0.0
    %161 = vmatprep.subr.mxu0 0.0
    %162 = vmatpush1.msra.mxu0 0.0
    %163 = vmatprep.subr.mxu0 0.0
    %164 = vmatpush1.msra.mxu0 %v28
    %165 = vmatprep.subr.mxu0 0.0
    %166 = vmatpush2.msra.mxu0 0.0
    %167 = vmatprep.subr.mxu0 0.0
    %168 = vmatpush2.msra.mxu0 0.0
    %169 = vmatprep.subr.mxu0 0.0
    %170 = vmatpush2.msra.mxu0 0.0
    %171 = vmatprep.subr.mxu0 0.0
    %172 = vmatpush2.msra.mxu0 0.0
    %173 = vmatprep.subr.mxu0 0.0
    %174 = vmatpush2.msra.mxu0 0.0
    %175 = vmatprep.subr.mxu0 0.0
    %176 = vmatpush2.msra.mxu0 0.0
    %177 = vmatprep.subr.mxu0 0.0
    %178 = vmatpush2.msra.mxu0 0.0
    %179 = vmatprep.subr.mxu0 0.0
    %180 = vmatpush2.msra.mxu0 0.0
    %181 = vmatprep.subr.mxu0 0.0
    %182 = vmatpush2.msra.mxu0 0.0
    %183 = vmatprep.subr.mxu0 0.0
    %184 = vmatpush2.msra.mxu0 0.0
    %185 = vmatprep.subr.mxu0 0.0
    %186 = vmatpush2.msra.mxu0 0.0
    %187 = vmatprep.subr.mxu0 0.0
    %188 = vmatpush2.msra.mxu0 0.0
    %189 = vmatprep.subr.mxu0 0.0
    %190 = vmatpush2.msra.mxu0 0.0
    %191 = vmatprep.subr.mxu0 0.0
    %192 = vmatpush2.msra.mxu0 0.0
    %193 = vmatprep.subr.mxu0 0.0
    %194 = vmatpush2.msra.mxu0 0.0
    %195 = vmatprep.subr.mxu0 0.0
    %196 = vmatpush2.msra.mxu0 0.0
    %197 = vmatprep.mubr.f32.mxu0 0.0
    %198 = vmatmul.mubr.f32.gmra.mxu0 %v131
    %v199 = vpop.f32.mrf.mxu0
    %v200 = vadd.f32 %v28, %v199
    %v201 = vpop.f32.mrf.mxu0
    %202 = vdwg.mxu0
    %v204 = vsel %vm30, %v27, 0
    %206 = vmatprep.subr.mxu0 0.0
    %207 = vmatpush1.msra.mxu0 0.0
    %208 = vmatprep.subr.mxu0 0.0
    %209 = vmatpush1.msra.mxu0 0.0
    %210 = vmatprep.subr.mxu0 0.0
    %211 = vmatpush1.msra.mxu0 0.0
    %212 = vmatprep.subr.mxu0 0.0
    %213 = vmatpush1.msra.mxu0 0.0
    %214 = vmatprep.subr.mxu0 0.0
    %215 = vmatpush1.msra.mxu0 0.0
    %216 = vmatprep.subr.mxu0 0.0
    %217 = vmatpush1.msra.mxu0 0.0
    %218 = vmatprep.subr.mxu0 0.0
    %219 = vmatpush1.msra.mxu0 0.0
    %220 = vmatprep.subr.mxu0 0.0
    %221 = vmatpush1.msra.mxu0 0.0
    %222 = vmatprep.subr.mxu0 0.0
    %223 = vmatpush1.msra.mxu0 0.0
    %224 = vmatprep.subr.mxu0 0.0
    %225 = vmatpush1.msra.mxu0 0.0
    %226 = vmatprep.subr.mxu0 0.0
    %227 = vmatpush1.msra.mxu0 0.0
    %228 = vmatprep.subr.mxu0 0.0
    %229 = vmatpush1.msra.mxu0 0.0
    %230 = vmatprep.subr.mxu0 0.0
    %231 = vmatpush1.msra.mxu0 0.0
    %232 = vmatprep.subr.mxu0 0.0
    %233 = vmatpush1.msra.mxu0 0.0
    %234 = vmatprep.subr.mxu0 0.0
    %235 = vmatpush1.msra.mxu0 0.0
    %236 = vmatprep.subr.mxu0 0.0
    %237 = vmatpush1.msra.mxu0 %v29
    %238 = vmatprep.subr.mxu0 0.0
    %239 = vmatpush2.msra.mxu0 0.0
    %240 = vmatprep.subr.mxu0 0.0
    %241 = vmatpush2.msra.mxu0 0.0
    %242 = vmatprep.subr.mxu0 0.0
    %243 = vmatpush2.msra.mxu0 0.0
    %244 = vmatprep.subr.mxu0 0.0
    %245 = vmatpush2.msra.mxu0 0.0
    %246 = vmatprep.subr.mxu0 0.0
    %247 = vmatpush2.msra.mxu0 0.0
    %248 = vmatprep.subr.mxu0 0.0
    %249 = vmatpush2.msra.mxu0 0.0
    %250 = vmatprep.subr.mxu0 0.0
    %251 = vmatpush2.msra.mxu0 0.0
    %252 = vmatprep.subr.mxu0 0.0
    %253 = vmatpush2.msra.mxu0 0.0
    %254 = vmatprep.subr.mxu0 0.0
    %255 = vmatpush2.msra.mxu0 0.0
    %256 = vmatprep.subr.mxu0 0.0
    %257 = vmatpush2.msra.mxu0 0.0
    %258 = vmatprep.subr.mxu0 0.0
    %259 = vmatpush2.msra.mxu0 0.0
    %260 = vmatprep.subr.mxu0 0.0
    %261 = vmatpush2.msra.mxu0 0.0
    %262 = vmatprep.subr.mxu0 0.0
    %263 = vmatpush2.msra.mxu0 0.0
    %264 = vmatprep.subr.mxu0 0.0
    %265 = vmatpush2.msra.mxu0 0.0
    %266 = vmatprep.subr.mxu0 0.0
    %267 = vmatpush2.msra.mxu0 0.0
    %268 = vmatprep.subr.mxu0 0.0
    %269 = vmatpush2.msra.mxu0 0.0
    %270 = vmatprep.mubr.f32.mxu0 0.0
    %271 = vmatmul.mubr.f32.gmra.mxu0 %v204
    %v272 = vpop.f32.mrf.mxu0
    %v273 = vadd.f32 %v29, %v272
    %v274 = vpop.f32.mrf.mxu0
    %275 = vdwg.mxu0
    %v276 = vld [vmem:[%s2] sm:$0xff]
    %v277 = vld [vmem:[%s2 + $0x8] sm:$0xff]
    %v278 = vld [vmem:[%s3] sm:$0x1]
    %vm279 = vcmask 130048
    %v281 = vsel %vm279, %v200, 0
    %v284 = vsel %vm279, %v273, 0
    %286 = vmatprep.subr.mxu0 0.0
    %287 = vmatpush1.msra.mxu0 0.0
    %288 = vmatprep.subr.mxu0 0.0
    %289 = vmatpush1.msra.mxu0 0.0
    %290 = vmatprep.subr.mxu0 0.0
    %291 = vmatpush1.msra.mxu0 0.0
    %292 = vmatprep.subr.mxu0 0.0
    %293 = vmatpush1.msra.mxu0 0.0
    %294 = vmatprep.subr.mxu0 0.0
    %295 = vmatpush1.msra.mxu0 0.0
    %296 = vmatprep.subr.mxu0 0.0
    %297 = vmatpush1.msra.mxu0 0.0
    %298 = vmatprep.subr.mxu0 0.0
    %299 = vmatpush1.msra.mxu0 0.0
    %300 = vmatprep.subr.mxu0 0.0
    %301 = vmatpush1.msra.mxu0 0.0
    %302 = vmatprep.subr.mxu0 0.0
    %303 = vmatpush1.msra.mxu0 0.0
    %304 = vmatprep.subr.mxu0 0.0
    %305 = vmatpush1.msra.mxu0 0.0
    %306 = vmatprep.subr.mxu0 0.0
    %307 = vmatpush1.msra.mxu0 0.0
    %308 = vmatprep.subr.mxu0 0.0
    %309 = vmatpush1.msra.mxu0 0.0
    %310 = vmatprep.subr.mxu0 0.0
    %311 = vmatpush1.msra.mxu0 0.0
    %312 = vmatprep.subr.mxu0 0.0
    %313 = vmatpush1.msra.mxu0 0.0
    %314 = vmatprep.subr.mxu0 0.0
    %315 = vmatpush1.msra.mxu0 %v277
    %316 = vmatprep.subr.mxu0 0.0
    %317 = vmatpush1.msra.mxu0 %v276
    %318 = vmatprep.subr.mxu0 0.0
    %319 = vmatpush2.msra.mxu0 0.0
    %320 = vmatprep.subr.mxu0 0.0
    %321 = vmatpush2.msra.mxu0 0.0
    %322 = vmatprep.subr.mxu0 0.0
    %323 = vmatpush2.msra.mxu0 0.0
    %324 = vmatprep.subr.mxu0 0.0
    %325 = vmatpush2.msra.mxu0 0.0
    %326 = vmatprep.subr.mxu0 0.0
    %327 = vmatpush2.msra.mxu0 0.0
    %328 = vmatprep.subr.mxu0 0.0
    %329 = vmatpush2.msra.mxu0 0.0
    %330 = vmatprep.subr.mxu0 0.0
    %331 = vmatpush2.msra.mxu0 0.0
    %332 = vmatprep.subr.mxu0 0.0
    %333 = vmatpush2.msra.mxu0 0.0
    %334 = vmatprep.subr.mxu0 0.0
    %335 = vmatpush2.msra.mxu0 0.0
    %336 = vmatprep.subr.mxu0 0.0
    %337 = vmatpush2.msra.mxu0 0.0
    %338 = vmatprep.subr.mxu0 0.0
    %339 = vmatpush2.msra.mxu0 0.0
    %340 = vmatprep.subr.mxu0 0.0
    %341 = vmatpush2.msra.mxu0 0.0
    %342 = vmatprep.subr.mxu0 0.0
    %343 = vmatpush2.msra.mxu0 0.0
    %344 = vmatprep.subr.mxu0 0.0
    %345 = vmatpush2.msra.mxu0 0.0
    %346 = vmatprep.subr.mxu0 0.0
    %347 = vmatpush2.msra.mxu0 0.0
    %348 = vmatprep.subr.mxu0 0.0
    %349 = vmatpush2.msra.mxu0 0.0
    %350 = vmatprep.mubr.f32.mxu0 0.0
    %351 = vmatmul.mubr.f32.gmra.mxu0 %v281
    %v352 = vpop.f32.mrf.mxu0
    %v353 = vadd.f32 0.0, %v352
    %v354 = vpop.f32.mrf.mxu0
    %355 = vmatprep.mubr.f32.mxu0 0.0
    %356 = vmatmul.mubr.f32.gmra.mxu0 %v284
    %v357 = vpop.f32.mrf.mxu0
    %v358 = vadd.f32 0.0, %v357
    %v359 = vpop.f32.mrf.mxu0
    %360 = vdwg.mxu0
    %v361 = vmul.f32 %v278, 2.0
    %v363 = vlaneseq
    %v364 = vshrl.u32 %v363, 7
    %v365 = vsub.s32 0, %v364
    %v366 = vrot.slane %v361, %v365
    %v368 = vadd.f32 %v353, %v366
    %v369 = vadd.f32 %v358, %v366
    %v370 = vmul.f32 %v368, %v40
    %v371 = vmul.f32 %v369, %v42
    %v372 = vmax.f32 %v370, 0.0
    %v373 = vmax.f32 %v371, 0.0
    %374 = vmatprep.subr.mxu0 0.0
    %375 = vmatpush1.msra.mxu0 0.0
    %376 = vmatprep.subr.mxu0 0.0
    %377 = vmatpush1.msra.mxu0 0.0
    %378 = vmatprep.subr.mxu0 0.0
    %379 = vmatpush1.msra.mxu0 0.0
    %380 = vmatprep.subr.mxu0 0.0
    %381 = vmatpush1.msra.mxu0 0.0
    %382 = vmatprep.subr.mxu0 0.0
    %383 = vmatpush1.msra.mxu0 0.0
    %384 = vmatprep.subr.mxu0 0.0
    %385 = vmatpush1.msra.mxu0 0.0
    %386 = vmatprep.subr.mxu0 0.0
    %387 = vmatpush1.msra.mxu0 0.0
    %388 = vmatprep.subr.mxu0 0.0
    %389 = vmatpush1.msra.mxu0 0.0
    %390 = vmatprep.subr.mxu0 0.0
    %391 = vmatpush1.msra.mxu0 0.0
    %392 = vmatprep.subr.mxu0 0.0
    %393 = vmatpush1.msra.mxu0 0.0
    %394 = vmatprep.subr.mxu0 0.0
    %395 = vmatpush1.msra.mxu0 0.0
    %396 = vmatprep.subr.mxu0 0.0
    %397 = vmatpush1.msra.mxu0 0.0
    %398 = vmatprep.subr.mxu0 0.0
    %399 = vmatpush1.msra.mxu0 0.0
    %400 = vmatprep.subr.mxu0 0.0
    %401 = vmatpush1.msra.mxu0 0.0
    %402 = vmatprep.subr.mxu0 0.0
    %403 = vmatpush1.msra.mxu0 0.0
    %404 = vmatprep.subr.mxu0 0.0
    %405 = vmatpush1.msra.mxu0 %v372
    %406 = vmatprep.subr.mxu0 0.0
    %407 = vmatpush2.msra.mxu0 0.0
    %408 = vmatprep.subr.mxu0 0.0
    %409 = vmatpush2.msra.mxu0 0.0
    %410 = vmatprep.subr.mxu0 0.0
    %411 = vmatpush2.msra.mxu0 0.0
    %412 = vmatprep.subr.mxu0 0.0
    %413 = vmatpush2.msra.mxu0 0.0
    %414 = vmatprep.subr.mxu0 0.0
    %415 = vmatpush2.msra.mxu0 0.0
    %416 = vmatprep.subr.mxu0 0.0
    %417 = vmatpush2.msra.mxu0 0.0
    %418 = vmatprep.subr.mxu0 0.0
    %419 = vmatpush2.msra.mxu0 0.0
    %420 = vmatprep.subr.mxu0 0.0
    %421 = vmatpush2.msra.mxu0 0.0
    %422 = vmatprep.subr.mxu0 0.0
    %423 = vmatpush2.msra.mxu0 0.0
    %424 = vmatprep.subr.mxu0 0.0
    %425 = vmatpush2.msra.mxu0 0.0
    %426 = vmatprep.subr.mxu0 0.0
    %427 = vmatpush2.msra.mxu0 0.0
    %428 = vmatprep.subr.mxu0 0.0
    %429 = vmatpush2.msra.mxu0 0.0
    %430 = vmatprep.subr.mxu0 0.0
    %431 = vmatpush2.msra.mxu0 0.0
    %432 = vmatprep.subr.mxu0 0.0
    %433 = vmatpush2.msra.mxu0 0.0
    %434 = vmatprep.subr.mxu0 0.0
    %435 = vmatpush2.msra.mxu0 0.0
    %436 = vmatprep.subr.mxu0 0.0
    %437 = vmatpush2.msra.mxu0 0.0
    %438 = vmatprep.mubr.f32.mxu0 0.0
    %439 = vmatmul.mubr.f32.gmra.mxu0 %v131
    %v440 = vpop.f32.mrf.mxu0
    %v441 = vadd.f32 %v372, %v440
    %v442 = vpop.f32.mrf.mxu0
    %443 = vdwg.mxu0
    %444 = vmatprep.subr.mxu0 0.0
    %445 = vmatpush1.msra.mxu0 0.0
    %446 = vmatprep.subr.mxu0 0.0
    %447 = vmatpush1.msra.mxu0 0.0
    %448 = vmatprep.subr.mxu0 0.0
    %449 = vmatpush1.msra.mxu0 0.0
    %450 = vmatprep.subr.mxu0 0.0
    %451 = vmatpush1.msra.mxu0 0.0
    %452 = vmatprep.subr.mxu0 0.0
    %453 = vmatpush1.msra.mxu0 0.0
    %454 = vmatprep.subr.mxu0 0.0
    %455 = vmatpush1.msra.mxu0 0.0
    %456 = vmatprep.subr.mxu0 0.0
    %457 = vmatpush1.msra.mxu0 0.0
    %458 = vmatprep.subr.mxu0 0.0
    %459 = vmatpush1.msra.mxu0 0.0
    %460 = vmatprep.subr.mxu0 0.0
    %461 = vmatpush1.msra.mxu0 0.0
    %462 = vmatprep.subr.mxu0 0.0
    %463 = vmatpush1.msra.mxu0 0.0
    %464 = vmatprep.subr.mxu0 0.0
    %465 = vmatpush1.msra.mxu0 0.0
    %466 = vmatprep.subr.mxu0 0.0
    %467 = vmatpush1.msra.mxu0 0.0
    %468 = vmatprep.subr.mxu0 0.0
    %469 = vmatpush1.msra.mxu0 0.0
    %470 = vmatprep.subr.mxu0 0.0
    %471 = vmatpush1.msra.mxu0 0.0
    %472 = vmatprep.subr.mxu0 0.0
    %473 = vmatpush1.msra.mxu0 0.0
    %474 = vmatprep.subr.mxu0 0.0
    %475 = vmatpush1.msra.mxu0 %v373
    %476 = vmatprep.subr.mxu0 0.0
    %477 = vmatpush2.msra.mxu0 0.0
    %478 = vmatprep.subr.mxu0 0.0
    %479 = vmatpush2.msra.mxu0 0.0
    %480 = vmatprep.subr.mxu0 0.0
    %481 = vmatpush2.msra.mxu0 0.0
    %482 = vmatprep.subr.mxu0 0.0
    %483 = vmatpush2.msra.mxu0 0.0
    %484 = vmatprep.subr.mxu0 0.0
    %485 = vmatpush2.msra.mxu0 0.0
    %486 = vmatprep.subr.mxu0 0.0
    %487 = vmatpush2.msra.mxu0 0.0
    %488 = vmatprep.subr.mxu0 0.0
    %489 = vmatpush2.msra.mxu0 0.0
    %490 = vmatprep.subr.mxu0 0.0
    %491 = vmatpush2.msra.mxu0 0.0
    %492 = vmatprep.subr.mxu0 0.0
    %493 = vmatpush2.msra.mxu0 0.0
    %494 = vmatprep.subr.mxu0 0.0
    %495 = vmatpush2.msra.mxu0 0.0
    %496 = vmatprep.subr.mxu0 0.0
    %497 = vmatpush2.msra.mxu0 0.0
    %498 = vmatprep.subr.mxu0 0.0
    %499 = vmatpush2.msra.mxu0 0.0
    %500 = vmatprep.subr.mxu0 0.0
    %501 = vmatpush2.msra.mxu0 0.0
    %502 = vmatprep.subr.mxu0 0.0
    %503 = vmatpush2.msra.mxu0 0.0
    %504 = vmatprep.subr.mxu0 0.0
    %505 = vmatpush2.msra.mxu0 0.0
    %506 = vmatprep.subr.mxu0 0.0
    %507 = vmatpush2.msra.mxu0 0.0
    %508 = vmatprep.mubr.f32.mxu0 0.0
    %509 = vmatmul.mubr.f32.gmra.mxu0 %v204
    %v510 = vpop.f32.mrf.mxu0
    %v511 = vadd.f32 %v373, %v510
    %v512 = vpop.f32.mrf.mxu0
    %513 = vdwg.mxu0
    %v514 = vld [vmem:[%s4] sm:$0xff]
    %v515 = vld [vmem:[%s4 + $0x8] sm:$0xff]
    %v516 = vld [vmem:[%s4 + $0x10] sm:$0xff]
    %v517 = vld [vmem:[%s4 + $0x18] sm:$0xff]
    %v518 = vld [vmem:[%s5] sm:$0x1]
    %vm519 = vcmask 261120
    %v521 = vsel %vm519, %v441, 0
    %v524 = vsel %vm519, %v511, 0
    %526 = vmatprep.subr.mxu0 0.0
    %527 = vmatpush1.msra.mxu0 0.0
    %528 = vmatprep.subr.mxu0 0.0
    %529 = vmatpush1.msra.mxu0 0.0
    %530 = vmatprep.subr.mxu0 0.0
    %531 = vmatpush1.msra.mxu0 0.0
    %532 = vmatprep.subr.mxu0 0.0
    %533 = vmatpush1.msra.mxu0 0.0
    %534 = vmatprep.subr.mxu0 0.0
    %535 = vmatpush1.msra.mxu0 0.0
    %536 = vmatprep.subr.mxu0 0.0
    %537 = vmatpush1.msra.mxu0 0.0
    %538 = vmatprep.subr.mxu0 0.0
    %539 = vmatpush1.msra.mxu0 0.0
    %540 = vmatprep.subr.mxu0 0.0
    %541 = vmatpush1.msra.mxu0 0.0
    %542 = vmatprep.subr.mxu0 0.0
    %543 = vmatpush1.msra.mxu0 0.0
    %544 = vmatprep.subr.mxu0 0.0
    %545 = vmatpush1.msra.mxu0 0.0
    %546 = vmatprep.subr.mxu0 0.0
    %547 = vmatpush1.msra.mxu0 0.0
    %548 = vmatprep.subr.mxu0 0.0
    %549 = vmatpush1.msra.mxu0 0.0
    %550 = vmatprep.subr.mxu0 0.0
    %551 = vmatpush1.msra.mxu0 %v517
    %552 = vmatprep.subr.mxu0 0.0
    %553 = vmatpush1.msra.mxu0 %v516
    %554 = vmatprep.subr.mxu0 0.0
    %555 = vmatpush1.msra.mxu0 %v515
    %556 = vmatprep.subr.mxu0 0.0
    %557 = vmatpush1.msra.mxu0 %v514
    %558 = vmatprep.subr.mxu0 0.0
    %559 = vmatpush2.msra.mxu0 0.0
    %560 = vmatprep.subr.mxu0 0.0
    %561 = vmatpush2.msra.mxu0 0.0
    %562 = vmatprep.subr.mxu0 0.0
    %563 = vmatpush2.msra.mxu0 0.0
    %564 = vmatprep.subr.mxu0 0.0
    %565 = vmatpush2.msra.mxu0 0.0
    %566 = vmatprep.subr.mxu0 0.0
    %567 = vmatpush2.msra.mxu0 0.0
    %568 = vmatprep.subr.mxu0 0.0
    %569 = vmatpush2.msra.mxu0 0.0
    %570 = vmatprep.subr.mxu0 0.0
    %571 = vmatpush2.msra.mxu0 0.0
    %572 = vmatprep.subr.mxu0 0.0
    %573 = vmatpush2.msra.mxu0 0.0
    %574 = vmatprep.subr.mxu0 0.0
    %575 = vmatpush2.msra.mxu0 0.0
    %576 = vmatprep.subr.mxu0 0.0
    %577 = vmatpush2.msra.mxu0 0.0
    %578 = vmatprep.subr.mxu0 0.0
    %579 = vmatpush2.msra.mxu0 0.0
    %580 = vmatprep.subr.mxu0 0.0
    %581 = vmatpush2.msra.mxu0 0.0
    %582 = vmatprep.subr.mxu0 0.0
    %583 = vmatpush2.msra.mxu0 0.0
    %584 = vmatprep.subr.mxu0 0.0
    %585 = vmatpush2.msra.mxu0 0.0
    %586 = vmatprep.subr.mxu0 0.0
    %587 = vmatpush2.msra.mxu0 0.0
    %588 = vmatprep.subr.mxu0 0.0
    %589 = vmatpush2.msra.mxu0 0.0
    %590 = vmatprep.mubr.f32.mxu0 0.0
    %591 = vmatmul.mubr.f32.gmra.mxu0 %v521
    %v592 = vpop.f32.mrf.mxu0
    %v593 = vadd.f32 0.0, %v592
    %v594 = vpop.f32.mrf.mxu0
    %595 = vmatprep.mubr.f32.mxu0 0.0
    %596 = vmatmul.mubr.f32.gmra.mxu0 %v524
    %v597 = vpop.f32.mrf.mxu0
    %v598 = vadd.f32 0.0, %v597
    %v599 = vpop.f32.mrf.mxu0
    %600 = vdwg.mxu0
    %v601 = vmul.f32 %v518, 2.0
    %v603 = vlaneseq
    %v604 = vshrl.u32 %v603, 7
    %v605 = vsub.s32 0, %v604
    %v606 = vrot.slane %v601, %v605
    %v608 = vadd.f32 %v593, %v606
    %v609 = vadd.f32 %v598, %v606
    %v610 = vmul.f32 %v608, %v40
    %v611 = vmul.f32 %v609, %v42
    %v612 = vmax.f32 %v610, 0.0
    %v613 = vmax.f32 %v611, 0.0
    %614 = vmatprep.subr.mxu0 0.0
    %615 = vmatpush1.msra.mxu0 0.0
    %616 = vmatprep.subr.mxu0 0.0
    %617 = vmatpush1.msra.mxu0 0.0
    %618 = vmatprep.subr.mxu0 0.0
    %619 = vmatpush1.msra.mxu0 0.0
    %620 = vmatprep.subr.mxu0 0.0
    %621 = vmatpush1.msra.mxu0 0.0
    %622 = vmatprep.subr.mxu0 0.0
    %623 = vmatpush1.msra.mxu0 0.0
    %624 = vmatprep.subr.mxu0 0.0
    %625 = vmatpush1.msra.mxu0 0.0
    %626 = vmatprep.subr.mxu0 0.0
    %627 = vmatpush1.msra.mxu0 0.0
    %628 = vmatprep.subr.mxu0 0.0
    %629 = vmatpush1.msra.mxu0 0.0
    %630 = vmatprep.subr.mxu0 0.0
    %631 = vmatpush1.msra.mxu0 0.0
    %632 = vmatprep.subr.mxu0 0.0
    %633 = vmatpush1.msra.mxu0 0.0
    %634 = vmatprep.subr.mxu0 0.0
    %635 = vmatpush1.msra.mxu0 0.0
    %636 = vmatprep.subr.mxu0 0.0
    %637 = vmatpush1.msra.mxu0 0.0
    %638 = vmatprep.subr.mxu0 0.0
    %639 = vmatpush1.msra.mxu0 0.0
    %640 = vmatprep.subr.mxu0 0.0
    %641 = vmatpush1.msra.mxu0 0.0
    %642 = vmatprep.subr.mxu0 0.0
    %643 = vmatpush1.msra.mxu0 0.0
    %644 = vmatprep.subr.mxu0 0.0
    %645 = vmatpush1.msra.mxu0 %v612
    %646 = vmatprep.subr.mxu0 0.0
    %647 = vmatpush2.msra.mxu0 0.0
    %648 = vmatprep.subr.mxu0 0.0
    %649 = vmatpush2.msra.mxu0 0.0
    %650 = vmatprep.subr.mxu0 0.0
    %651 = vmatpush2.msra.mxu0 0.0
    %652 = vmatprep.subr.mxu0 0.0
    %653 = vmatpush2.msra.mxu0 0.0
    %654 = vmatprep.subr.mxu0 0.0
    %655 = vmatpush2.msra.mxu0 0.0
    %656 = vmatprep.subr.mxu0 0.0
    %657 = vmatpush2.msra.mxu0 0.0
    %658 = vmatprep.subr.mxu0 0.0
    %659 = vmatpush2.msra.mxu0 0.0
    %660 = vmatprep.subr.mxu0 0.0
    %661 = vmatpush2.msra.mxu0 0.0
    %662 = vmatprep.subr.mxu0 0.0
    %663 = vmatpush2.msra.mxu0 0.0
    %664 = vmatprep.subr.mxu0 0.0
    %665 = vmatpush2.msra.mxu0 0.0
    %666 = vmatprep.subr.mxu0 0.0
    %667 = vmatpush2.msra.mxu0 0.0
    %668 = vmatprep.subr.mxu0 0.0
    %669 = vmatpush2.msra.mxu0 0.0
    %670 = vmatprep.subr.mxu0 0.0
    %671 = vmatpush2.msra.mxu0 0.0
    %672 = vmatprep.subr.mxu0 0.0
    %673 = vmatpush2.msra.mxu0 0.0
    %674 = vmatprep.subr.mxu0 0.0
    %675 = vmatpush2.msra.mxu0 0.0
    %676 = vmatprep.subr.mxu0 0.0
    %677 = vmatpush2.msra.mxu0 0.0
    %678 = vmatprep.mubr.f32.mxu0 0.0
    %679 = vmatmul.mubr.f32.gmra.mxu0 %v131
    %v680 = vpop.f32.mrf.mxu0
    %v681 = vadd.f32 %v612, %v680
    %v682 = vpop.f32.mrf.mxu0
    %683 = vdwg.mxu0
    %684 = vmatprep.subr.mxu0 0.0
    %685 = vmatpush1.msra.mxu0 0.0
    %686 = vmatprep.subr.mxu0 0.0
    %687 = vmatpush1.msra.mxu0 0.0
    %688 = vmatprep.subr.mxu0 0.0
    %689 = vmatpush1.msra.mxu0 0.0
    %690 = vmatprep.subr.mxu0 0.0
    %691 = vmatpush1.msra.mxu0 0.0
    %692 = vmatprep.subr.mxu0 0.0
    %693 = vmatpush1.msra.mxu0 0.0
    %694 = vmatprep.subr.mxu0 0.0
    %695 = vmatpush1.msra.mxu0 0.0
    %696 = vmatprep.subr.mxu0 0.0
    %697 = vmatpush1.msra.mxu0 0.0
    %698 = vmatprep.subr.mxu0 0.0
    %699 = vmatpush1.msra.mxu0 0.0
    %700 = vmatprep.subr.mxu0 0.0
    %701 = vmatpush1.msra.mxu0 0.0
    %702 = vmatprep.subr.mxu0 0.0
    %703 = vmatpush1.msra.mxu0 0.0
    %704 = vmatprep.subr.mxu0 0.0
    %705 = vmatpush1.msra.mxu0 0.0
    %706 = vmatprep.subr.mxu0 0.0
    %707 = vmatpush1.msra.mxu0 0.0
    %708 = vmatprep.subr.mxu0 0.0
    %709 = vmatpush1.msra.mxu0 0.0
    %710 = vmatprep.subr.mxu0 0.0
    %711 = vmatpush1.msra.mxu0 0.0
    %712 = vmatprep.subr.mxu0 0.0
    %713 = vmatpush1.msra.mxu0 0.0
    %714 = vmatprep.subr.mxu0 0.0
    %715 = vmatpush1.msra.mxu0 %v613
    %716 = vmatprep.subr.mxu0 0.0
    %717 = vmatpush2.msra.mxu0 0.0
    %718 = vmatprep.subr.mxu0 0.0
    %719 = vmatpush2.msra.mxu0 0.0
    %720 = vmatprep.subr.mxu0 0.0
    %721 = vmatpush2.msra.mxu0 0.0
    %722 = vmatprep.subr.mxu0 0.0
    %723 = vmatpush2.msra.mxu0 0.0
    %724 = vmatprep.subr.mxu0 0.0
    %725 = vmatpush2.msra.mxu0 0.0
    %726 = vmatprep.subr.mxu0 0.0
    %727 = vmatpush2.msra.mxu0 0.0
    %728 = vmatprep.subr.mxu0 0.0
    %729 = vmatpush2.msra.mxu0 0.0
    %730 = vmatprep.subr.mxu0 0.0
    %731 = vmatpush2.msra.mxu0 0.0
    %732 = vmatprep.subr.mxu0 0.0
    %733 = vmatpush2.msra.mxu0 0.0
    %734 = vmatprep.subr.mxu0 0.0
    %735 = vmatpush2.msra.mxu0 0.0
    %736 = vmatprep.subr.mxu0 0.0
    %737 = vmatpush2.msra.mxu0 0.0
    %738 = vmatprep.subr.mxu0 0.0
    %739 = vmatpush2.msra.mxu0 0.0
    %740 = vmatprep.subr.mxu0 0.0
    %741 = vmatpush2.msra.mxu0 0.0
    %742 = vmatprep.subr.mxu0 0.0
    %743 = vmatpush2.msra.mxu0 0.0
    %744 = vmatprep.subr.mxu0 0.0
    %745 = vmatpush2.msra.mxu0 0.0
    %746 = vmatprep.subr.mxu0 0.0
    %747 = vmatpush2.msra.mxu0 0.0
    %748 = vmatprep.mubr.f32.mxu0 0.0
    %749 = vmatmul.mubr.f32.gmra.mxu0 %v204
    %v750 = vpop.f32.mrf.mxu0
    %v751 = vadd.f32 %v613, %v750
    %v752 = vpop.f32.mrf.mxu0
    %753 = vdwg.mxu0
    %s754 = scalar_lea.vmem %s4, 32
    %v755 = vld [vmem:[%s754] sm:$0xff]
    %v756 = vld [vmem:[%s754 + $0x8] sm:$0xff]
    %v757 = vld [vmem:[%s754 + $0x10] sm:$0xff]
    %v758 = vld [vmem:[%s754 + $0x18] sm:$0xff]
    %s759 = scalar_lea.vmem %s5, 1
    %v760 = vld [vmem:[%s759] sm:$0x1]
    %v762 = vsel %vm519, %v681, 0
    %v765 = vsel %vm519, %v751, 0
    %767 = vmatprep.subr.mxu0 0.0
    %768 = vmatpush1.msra.mxu0 0.0
    %769 = vmatprep.subr.mxu0 0.0
    %770 = vmatpush1.msra.mxu0 0.0
    %771 = vmatprep.subr.mxu0 0.0
    %772 = vmatpush1.msra.mxu0 0.0
    %773 = vmatprep.subr.mxu0 0.0
    %774 = vmatpush1.msra.mxu0 0.0
    %775 = vmatprep.subr.mxu0 0.0
    %776 = vmatpush1.msra.mxu0 0.0
    %777 = vmatprep.subr.mxu0 0.0
    %778 = vmatpush1.msra.mxu0 0.0
    %779 = vmatprep.subr.mxu0 0.0
    %780 = vmatpush1.msra.mxu0 0.0
    %781 = vmatprep.subr.mxu0 0.0
    %782 = vmatpush1.msra.mxu0 0.0
    %783 = vmatprep.subr.mxu0 0.0
    %784 = vmatpush1.msra.mxu0 0.0
    %785 = vmatprep.subr.mxu0 0.0
    %786 = vmatpush1.msra.mxu0 0.0
    %787 = vmatprep.subr.mxu0 0.0
    %788 = vmatpush1.msra.mxu0 0.0
    %789 = vmatprep.subr.mxu0 0.0
    %790 = vmatpush1.msra.mxu0 0.0
    %791 = vmatprep.subr.mxu0 0.0
    %792 = vmatpush1.msra.mxu0 %v758
    %793 = vmatprep.subr.mxu0 0.0
    %794 = vmatpush1.msra.mxu0 %v757
    %795 = vmatprep.subr.mxu0 0.0
    %796 = vmatpush1.msra.mxu0 %v756
    %797 = vmatprep.subr.mxu0 0.0
    %798 = vmatpush1.msra.mxu0 %v755
    %799 = vmatprep.subr.mxu0 0.0
    %800 = vmatpush2.msra.mxu0 0.0
    %801 = vmatprep.subr.mxu0 0.0
    %802 = vmatpush2.msra.mxu0 0.0
    %803 = vmatprep.subr.mxu0 0.0
    %804 = vmatpush2.msra.mxu0 0.0
    %805 = vmatprep.subr.mxu0 0.0
    %806 = vmatpush2.msra.mxu0 0.0
    %807 = vmatprep.subr.mxu0 0.0
    %808 = vmatpush2.msra.mxu0 0.0
    %809 = vmatprep.subr.mxu0 0.0
    %810 = vmatpush2.msra.mxu0 0.0
    %811 = vmatprep.subr.mxu0 0.0
    %812 = vmatpush2.msra.mxu0 0.0
    %813 = vmatprep.subr.mxu0 0.0
    %814 = vmatpush2.msra.mxu0 0.0
    %815 = vmatprep.subr.mxu0 0.0
    %816 = vmatpush2.msra.mxu0 0.0
    %817 = vmatprep.subr.mxu0 0.0
    %818 = vmatpush2.msra.mxu0 0.0
    %819 = vmatprep.subr.mxu0 0.0
    %820 = vmatpush2.msra.mxu0 0.0
    %821 = vmatprep.subr.mxu0 0.0
    %822 = vmatpush2.msra.mxu0 0.0
    %823 = vmatprep.subr.mxu0 0.0
    %824 = vmatpush2.msra.mxu0 0.0
    %825 = vmatprep.subr.mxu0 0.0
    %826 = vmatpush2.msra.mxu0 0.0
    %827 = vmatprep.subr.mxu0 0.0
    %828 = vmatpush2.msra.mxu0 0.0
    %829 = vmatprep.subr.mxu0 0.0
    %830 = vmatpush2.msra.mxu0 0.0
    %831 = vmatprep.mubr.f32.mxu0 0.0
    %832 = vmatmul.mubr.f32.gmra.mxu0 %v762
    %v833 = vpop.f32.mrf.mxu0
    %v834 = vadd.f32 0.0, %v833
    %v835 = vpop.f32.mrf.mxu0
    %836 = vmatprep.mubr.f32.mxu0 0.0
    %837 = vmatmul.mubr.f32.gmra.mxu0 %v765
    %v838 = vpop.f32.mrf.mxu0
    %v839 = vadd.f32 0.0, %v838
    %v840 = vpop.f32.mrf.mxu0
    %841 = vdwg.mxu0
    %v842 = vmul.f32 %v760, 2.0
    %v844 = vlaneseq
    %v845 = vshrl.u32 %v844, 7
    %v846 = vsub.s32 0, %v845
    %v847 = vrot.slane %v842, %v846
    %v849 = vadd.f32 %v834, %v847
    %v850 = vadd.f32 %v839, %v847
    %v851 = vmul.f32 %v849, %v40
    %v852 = vmul.f32 %v850, %v42
    %v853 = vmax.f32 %v851, 0.0
    %v854 = vmax.f32 %v852, 0.0
    %855 = vst.msk [vmem:[#allocation2] sm:$0xff] %vm519, %v853
    %856 = vst.msk [vmem:[#allocation2 + $0x8] sm:$0xff] %vm519, %v854
    // Predicated region
    $region26: #{gcn_forward.1} parent=1 // pred_check
      _
    $region27: #{gcn_forward.1} parent=1 // pred_check_branch
      %858 = sbr.rel (0) target = $region29
    $region28: #{gcn_forward.1} parent=1 // pred_region
      %s860 = ssub.s32 256, 256
      %861 = vsyncadd [#allocation3], %s860
      %s862 = sshll.u32 [#allocation2], 4
      %s863 = int_to_ptr.vmem [resolvable:$true] %s862
      %868 = dma.vmem_to_hbm [thread:$0]  %s863, 256, %s6, [#allocation3], 128, 128, 8
    $region29: #{gcn_forward.1} parent=1 // pred_fallthru
      _
    // Predicated region
    $region30: #{gcn_forward.1} parent=1 // pred_check
      _
    $region31: #{gcn_forward.1} parent=1 // pred_check_branch
      %870 = sbr.rel (0) target = $region33
    $region32: #{gcn_forward.1} parent=1 // pred_region
      _
    $region33: #{gcn_forward.1} parent=1 // pred_fallthru
      _
    // Predicated region
    $region34: #{gcn_forward.1} parent=1 // pred_check
      _
    $region35: #{gcn_forward.1} parent=1 // pred_check_branch
      %872 = sbr.rel (0) target = $region37
    $region36: #{gcn_forward.1} parent=1 // pred_region
      %873 = dma.done [#allocation3], 256
    $region37: #{gcn_forward.1} parent=1 // pred_fallthru
      _
    // Predicated region
    $region38: #{gcn_forward.1} parent=1 // pred_check
      _
    $region39: #{gcn_forward.1} parent=1 // pred_check_branch
      %875 = sbr.rel (0) target = $region41
    $region40: #{gcn_forward.1} parent=1 // pred_region
      _
    $region41: #{gcn_forward.1} parent=1 // pred_fallthru
      _
    %876 = vsyncpa [#allocation3], 1

</llo_original>
